<compile_context>
chip_gen: v5e
topology: v5e:2x2
jax: 0.10.0
libtpu: 0.0.40
codegen_flags: <defaults>
</compile_context>

<pallas_src>
import functools

import jax
import jax.numpy as jnp
from jax.experimental import pallas as pl
from jax.experimental.pallas import tpu as pltpu  # noqa: F401  (TPU backend)

EPS = 1e-5
LANES = 128


def _round_up(x, m):
    return (x + m - 1) // m * m


# ----------------------------------------------------------------------------
# Fused Conv2d(3x3, s=1, p=1) + BatchNorm2d + ReLU + MaxPool2d(2,2) kernel.
# Single matmul: (4*n_rows, K) @ (K, 128) with BN scale pre-folded into the
# weight; epilogue = +bias, ReLU, then max over the 4 aligned pooling-group
# row blocks.
# ----------------------------------------------------------------------------
def _conv_bn_relu_pool_kernel(patches_ref, w_ref, bias_ref, out_ref, *, n_rows):
    # patches_ref: (4*n_rows, K)  -- 4 pooling-position blocks of im2col patches
    # w_ref:       (K, 128)       -- weight * BN scale, Cout zero-padded to 128
    # bias_ref:    (1, 128)       -- folded conv-bias + BN shift (0 in padding)
    # out_ref:     (n_rows, 128)
    y = jnp.dot(patches_ref[...], w_ref[...], preferred_element_type=jnp.float32)
    y = jnp.maximum(y + bias_ref[...], 0.0)        # BN(+bias) + ReLU (pre-pool, exact)
    n = n_rows
    pooled = jnp.maximum(jnp.maximum(y[0 * n:1 * n], y[1 * n:2 * n]),
                         jnp.maximum(y[2 * n:3 * n], y[3 * n:4 * n]))
    out_ref[...] = pooled.astype(out_ref.dtype)


def conv_bn_relu_pool(xcl, weight, conv_bias, gamma, beta, mean, var):
    """xcl: (B, H, W, Cin) channels-last f32; weight: (Cout, Cin, 3, 3) torch layout.

    Returns channels-last pooled output (B, H//2, W//2, Cout).
    """
    B, H, W, Cin = xcl.shape
    Cout = weight.shape[0]
    assert H % 2 == 0 and W % 2 == 0, "synthetic config uses even spatial sizes"
    Hp, Wp = H // 2, W // 2
    N2 = Hp * Wp
    K = Cin * 9
    n_rows = _round_up(B * N2, 8)          # 8-sublane align each pooling block

    # ---- glue (plain JAX, tiny arrays): pad + im2col + pooling-group blocking ----
    xp = jnp.pad(xcl, ((0, 0), (1, 1), (1, 1), (0, 0)))
    # k order = (dh*3 + dw)*Cin + ci  (matches weight.transpose(2,3,1,0).reshape)
    cols = jnp.concatenate(
        [xp[:, dh:dh + H, dw:dw + W, :] for dh in range(3) for dw in range(3)],
        axis=-1)                                                  # (B, H, W, K)
    pad_rows = n_rows - B * N2
    blocks = []
    for di in range(2):
        for dj in range(2):
            g = cols[:, di::2, dj::2, :].reshape(B * N2, K)
            if pad_rows:
                g = jnp.pad(g, ((0, pad_rows), (0, 0)))
            blocks.append(g)
    patches = jnp.concatenate(blocks, axis=0)                     # (4*n_rows, K)

    # ---- fold BN into the matmul (eval-mode affine) ----
    w_mat = weight.transpose(2, 3, 1, 0).reshape(K, Cout)         # (K, Cout)
    scale = gamma / jnp.sqrt(var + EPS)
    bias = (conv_bias - mean) * scale + beta
    w_pad = jnp.zeros((K, LANES), jnp.float32).at[:, :Cout].set(w_mat * scale[None, :])
    bias_pad = jnp.zeros((1, LANES), jnp.float32).at[0, :Cout].set(bias)

    out = pl.pallas_call(
        functools.partial(_conv_bn_relu_pool_kernel, n_rows=n_rows),
        out_shape=jax.ShapeDtypeStruct((n_rows, LANES), jnp.float32),
        in_specs=[
            pl.BlockSpec((4 * n_rows, K), lambda: (0, 0)),
            pl.BlockSpec((K, LANES), lambda: (0, 0)),
            pl.BlockSpec((1, LANES), lambda: (0, 0)),
        ],
        out_specs=pl.BlockSpec((n_rows, LANES), lambda: (0, 0)),
    )(patches, w_pad, bias_pad)

    return out[:B * N2, :Cout].reshape(B, Hp, Wp, Cout)


# ----------------------------------------------------------------------------
# Classifier (nn.Linear) kernel -- rows padded to 8, out features padded to 128
# so the single store is lane-dense.
# ----------------------------------------------------------------------------
def _linear_kernel(x_ref, w_ref, b_ref, o_ref):
    o_ref[...] = (
        jnp.dot(x_ref[...], w_ref[...], preferred_element_type=jnp.float32)
        + b_ref[...]
    )


def linear(x, w, b):
    """x: (B, F); w: (out, F) torch layout; b: (out,)."""
    B, F = x.shape
    out_f = w.shape[0]
    Bp = _round_up(B, 8)
    out_p = _round_up(out_f, LANES)
    x_pad = jnp.zeros((Bp, F), jnp.float32).at[:B].set(x)
    w_pad = jnp.zeros((F, out_p), jnp.float32).at[:, :out_f].set(w.T)
    b_pad = jnp.zeros((1, out_p), jnp.float32).at[0, :out_f].set(b)
    out = pl.pallas_call(
        _linear_kernel,
        out_shape=jax.ShapeDtypeStruct((Bp, out_p), jnp.float32),
        in_specs=[
            pl.BlockSpec((Bp, F), lambda: (0, 0)),
            pl.BlockSpec((F, out_p), lambda: (0, 0)),
            pl.BlockSpec((1, out_p), lambda: (0, 0)),
        ],
        out_specs=pl.BlockSpec((Bp, out_p), lambda: (0, 0)),
    )(x_pad, w_pad, b_pad)
    return out[:B, :out_f]


# ----------------------------------------------------------------------------
# ConvNet4 forward
# ----------------------------------------------------------------------------
def convnet4_forward(params, x, hierarchical=False):
    if hierarchical:
        ls = []
        h = x.transpose(0, 2, 3, 1)             # NCHW -> channels-last, once
        for lp in params["layers"]:
            h = conv_bn_relu_pool(h, *lp)       # stays channels-last between layers
            ls.append(h.transpose(0, 3, 1, 2))  # returned feature maps are NCHW
        return ls
    # adaptiveAvg is nn.Identity() (use_adativeavg=False default), then flatten
    B = x.shape[0]
    xf = x.reshape(B, -1)
    return linear(xf, params["fc_w"], params["fc_b"])


# ----------------------------------------------------------------------------
# Deterministic parameter init (shapes from ConvNet4.__init__)
# ----------------------------------------------------------------------------
def init_params(key):
    channel = (8, 16, 32, 64, 6)
    in_chs = (1, 8, 16, 32)
    layers = []
    for i, (cin, cout) in enumerate(zip(in_chs, channel[:4])):
        k = jax.random.fold_in(key, i)
        kw, kb, kg, kbe, km, kv = jax.random.split(k, 6)
        fan_in = cin * 9
        weight = jax.random.normal(kw, (cout, cin, 3, 3), jnp.float32) * jnp.sqrt(2.0 / fan_in)
        bias = 0.01 * jax.random.normal(kb, (cout,), jnp.float32)
        gamma = 1.0 + 0.1 * jax.random.normal(kg, (cout,), jnp.float32)
        beta = 0.1 * jax.random.normal(kbe, (cout,), jnp.float32)
        mean = 0.1 * jax.random.normal(km, (cout,), jnp.float32)
        var = 1.0 + 0.1 * jax.random.uniform(kv, (cout,), jnp.float32)
        layers.append((weight, bias, gamma, beta, mean, var))
    # GetFeatureMapSize('ucihar', 4, padding=True) with 16x16 input, pool(2,2,0)
    h, w = 16 // 16, 16 // 16
    in_features = channel[3] * h * w
    kf = jax.random.fold_in(key, 100)
    kfw, kfb = jax.random.split(kf)
    fc_w = jax.random.normal(kfw, (channel[4], in_features), jnp.float32) * jnp.sqrt(1.0 / in_features)
    fc_b = 0.01 * jax.random.normal(kfb, (channel[4],), jnp.float32)
    return {"layers": layers, "fc_w": fc_w, "fc_b": fc_b}


# ----------------------------------------------------------------------------
# Plain-JAX reference (for correctness check)
# ----------------------------------------------------------------------------
def _ref_layer(x, weight, conv_bias, gamma, beta, mean, var):
    y = jax.lax.conv_general_dilated(
        x, weight, window_strides=(1, 1), padding=((1, 1), (1, 1)),
        dimension_numbers=("NCHW", "OIHW", "NCHW"))
    y = y + conv_bias.reshape(1, -1, 1, 1)
    y = (y - mean.reshape(1, -1, 1, 1)) / jnp.sqrt(var.reshape(1, -1, 1, 1) + EPS)
    y = y * gamma.reshape(1, -1, 1, 1) + beta.reshape(1, -1, 1, 1)
    y = jnp.maximum(y, 0.0)
    B, C, H, W = y.shape
    return y.reshape(B, C, H // 2, 2, W // 2, 2).max(axis=(3, 5))


def _max_abs_diff(a, b):
    return float(jnp.max(jnp.abs(a - b)))


if __name__ == "__main__":
    key = jax.random.PRNGKey(0)
    params = init_params(key)

    x = jax.random.normal(jax.random.fold_in(key, 123), (2, 1, 16, 16), jnp.float32)

    fwd = jax.jit(convnet4_forward, static_argnames="hierarchical")

    # hierarchical path: layer1..layer4 (the conv hot path, in Pallas)
    feats = fwd(params, x, hierarchical=True)
    feats = [jax.block_until_ready(f) for f in feats]

    # default path: Identity -> flatten -> classifier (Pallas matmul).
    # Input must flatten to the classifier's in_features (64) as in the module.
    logits = fwd(params, feats[-1], hierarchical=False)
    logits = jax.block_until_ready(logits)

    # --- correctness check vs plain-JAX reference ---
    ref = x
    for i, lp in enumerate(params["layers"]):
        ref = _ref_layer(ref, *lp)
        assert feats[i].shape == ref.shape, (feats[i].shape, ref.shape)
        assert _max_abs_diff(feats[i], ref) < 1e-2, f"layer{i+1} mismatch"
    logits_ref = feats[-1].reshape(2, -1) @ params["fc_w"].T + params["fc_b"]
    assert logits.shape == (2, 6)
    assert _max_abs_diff(logits, logits_ref) < 1e-2, "classifier mismatch"

    print("KERNEL_OK")
</pallas_src>

<mosaic_0001>
module attributes {stable_mosaic.version = 11 : i64} {
  func.func @_conv_bn_relu_pool_kernel(%arg0: memref<512x9xf32, #tpu.memory_space<vmem>>, %arg1: memref<9x128xf32, #tpu.memory_space<vmem>>, %arg2: memref<1x128xf32, #tpu.memory_space<vmem>>, %arg3: memref<128x128xf32, #tpu.memory_space<vmem>>) attributes {dimension_semantics = [], scalar_prefetch = 0 : i64, scratch_operands = 0 : i64, tpu.core_type = #tpu.core_type<tc>} {
    %c0 = arith.constant 0 : index
    %c0_0 = arith.constant 0 : index
    %0 = vector.load %arg0[%c0, %c0_0] : memref<512x9xf32, #tpu.memory_space<vmem>>, vector<512x9xf32>
    %c0_1 = arith.constant 0 : index
    %c0_2 = arith.constant 0 : index
    %1 = vector.load %arg1[%c0_1, %c0_2] : memref<9x128xf32, #tpu.memory_space<vmem>>, vector<9x128xf32>
    %cst = arith.constant dense<0.000000e+00> : vector<512x128xf32>
    %2 = tpu.matmul %0, %1, %cst {dimension_numbers = #tpu.dot_dimension_numbers<[1], [0], [0], [1], [0, 0, 1, 1], [], []>} : vector<512x9xf32>, vector<9x128xf32>, vector<512x128xf32> -> vector<512x128xf32>
    %c0_3 = arith.constant 0 : index
    %c0_4 = arith.constant 0 : index
    %3 = vector.load %arg2[%c0_3, %c0_4] : memref<1x128xf32, #tpu.memory_space<vmem>>, vector<1x128xf32>
    %4 = vector.broadcast %3 : vector<1x128xf32> to vector<512x128xf32>
    %5 = arith.addf %2, %4 : vector<512x128xf32>
    %cst_5 = arith.constant 0.000000e+00 : f32
    %6 = vector.broadcast %cst_5 : f32 to vector<512x128xf32>
    %7 = arith.maximumf %5, %6 : vector<512x128xf32>
    %8 = vector.extract_strided_slice %7 {offsets = [0, 0], sizes = [128, 128], strides = [1, 1]} : vector<512x128xf32> to vector<128x128xf32>
    %9 = vector.extract_strided_slice %7 {offsets = [128, 0], sizes = [128, 128], strides = [1, 1]} : vector<512x128xf32> to vector<128x128xf32>
    %10 = arith.maximumf %8, %9 : vector<128x128xf32>
    %11 = vector.extract_strided_slice %7 {offsets = [256, 0], sizes = [128, 128], strides = [1, 1]} : vector<512x128xf32> to vector<128x128xf32>
    %12 = vector.extract_strided_slice %7 {offsets = [384, 0], sizes = [128, 128], strides = [1, 1]} : vector<512x128xf32> to vector<128x128xf32>
    %13 = arith.maximumf %11, %12 : vector<128x128xf32>
    %14 = arith.maximumf %10, %13 : vector<128x128xf32>
    %c0_6 = arith.constant 0 : index
    %c0_7 = arith.constant 0 : index
    %15 = vector.load %arg3[%c0_6, %c0_7] : memref<128x128xf32, #tpu.memory_space<vmem>>, vector<128x128xf32>
    tpu.vector_store %arg3[%c0_6, %c0_7], %14 {strides = array<i32>} : memref<128x128xf32, #tpu.memory_space<vmem>>, vector<128x128xf32>,
    return
  }
}

module attributes {stable_mosaic.version = 11 : i64} {
  func.func @_conv_bn_relu_pool_kernel(%arg0: memref<128x72xf32, #tpu.memory_space<vmem>>, %arg1: memref<72x128xf32, #tpu.memory_space<vmem>>, %arg2: memref<1x128xf32, #tpu.memory_space<vmem>>, %arg3: memref<32x128xf32, #tpu.memory_space<vmem>>) attributes {dimension_semantics = [], scalar_prefetch = 0 : i64, scratch_operands = 0 : i64, tpu.core_type = #tpu.core_type<tc>} {
    %c0 = arith.constant 0 : index
    %c0_0 = arith.constant 0 : index
    %0 = vector.load %arg0[%c0, %c0_0] : memref<128x72xf32, #tpu.memory_space<vmem>>, vector<128x72xf32>
    %c0_1 = arith.constant 0 : index
    %c0_2 = arith.constant 0 : index
    %1 = vector.load %arg1[%c0_1, %c0_2] : memref<72x128xf32, #tpu.memory_space<vmem>>, vector<72x128xf32>
    %cst = arith.constant dense<0.000000e+00> : vector<128x128xf32>
    %2 = tpu.matmul %0, %1, %cst {dimension_numbers = #tpu.dot_dimension_numbers<[1], [0], [0], [1], [0, 0, 1, 1], [], []>} : vector<128x72xf32>, vector<72x128xf32>, vector<128x128xf32> -> vector<128x128xf32>
    %c0_3 = arith.constant 0 : index
    %c0_4 = arith.constant 0 : index
    %3 = vector.load %arg2[%c0_3, %c0_4] : memref<1x128xf32, #tpu.memory_space<vmem>>, vector<1x128xf32>
    %4 = vector.broadcast %3 : vector<1x128xf32> to vector<128x128xf32>
    %5 = arith.addf %2, %4 : vector<128x128xf32>
    %cst_5 = arith.constant 0.000000e+00 : f32
    %6 = vector.broadcast %cst_5 : f32 to vector<128x128xf32>
    %7 = arith.maximumf %5, %6 : vector<128x128xf32>
    %8 = vector.extract_strided_slice %7 {offsets = [0, 0], sizes = [32, 128], strides = [1, 1]} : vector<128x128xf32> to vector<32x128xf32>
    %9 = vector.extract_strided_slice %7 {offsets = [32, 0], sizes = [32, 128], strides = [1, 1]} : vector<128x128xf32> to vector<32x128xf32>
    %10 = arith.maximumf %8, %9 : vector<32x128xf32>
    %11 = vector.extract_strided_slice %7 {offsets = [64, 0], sizes = [32, 128], strides = [1, 1]} : vector<128x128xf32> to vector<32x128xf32>
    %12 = vector.extract_strided_slice %7 {offsets = [96, 0], sizes = [32, 128], strides = [1, 1]} : vector<128x128xf32> to vector<32x128xf32>
    %13 = arith.maximumf %11, %12 : vector<32x128xf32>
    %14 = arith.maximumf %10, %13 : vector<32x128xf32>
    %c0_6 = arith.constant 0 : index
    %c0_7 = arith.constant 0 : index
    %15 = vector.load %arg3[%c0_6, %c0_7] : memref<32x128xf32, #tpu.memory_space<vmem>>, vector<32x128xf32>
    tpu.vector_store %arg3[%c0_6, %c0_7], %14 {strides = array<i32>} : memref<32x128xf32, #tpu.memory_space<vmem>>, vector<32x128xf32>,
    return
  }
}

module attributes {stable_mosaic.version = 11 : i64} {
  func.func @_conv_bn_relu_pool_kernel(%arg0: memref<32x144xf32, #tpu.memory_space<vmem>>, %arg1: memref<144x128xf32, #tpu.memory_space<vmem>>, %arg2: memref<1x128xf32, #tpu.memory_space<vmem>>, %arg3: memref<8x128xf32, #tpu.memory_space<vmem>>) attributes {dimension_semantics = [], scalar_prefetch = 0 : i64, scratch_operands = 0 : i64, tpu.core_type = #tpu.core_type<tc>} {
    %c0 = arith.constant 0 : index
    %c0_0 = arith.constant 0 : index
    %0 = vector.load %arg0[%c0, %c0_0] : memref<32x144xf32, #tpu.memory_space<vmem>>, vector<32x144xf32>
    %c0_1 = arith.constant 0 : index
    %c0_2 = arith.constant 0 : index
    %1 = vector.load %arg1[%c0_1, %c0_2] : memref<144x128xf32, #tpu.memory_space<vmem>>, vector<144x128xf32>
    %cst = arith.constant dense<0.000000e+00> : vector<32x128xf32>
    %2 = tpu.matmul %0, %1, %cst {dimension_numbers = #tpu.dot_dimension_numbers<[1], [0], [0], [1], [0, 0, 1, 1], [], []>} : vector<32x144xf32>, vector<144x128xf32>, vector<32x128xf32> -> vector<32x128xf32>
    %c0_3 = arith.constant 0 : index
    %c0_4 = arith.constant 0 : index
    %3 = vector.load %arg2[%c0_3, %c0_4] : memref<1x128xf32, #tpu.memory_space<vmem>>, vector<1x128xf32>
    %4 = vector.broadcast %3 : vector<1x128xf32> to vector<32x128xf32>
    %5 = arith.addf %2, %4 : vector<32x128xf32>
    %cst_5 = arith.constant 0.000000e+00 : f32
    %6 = vector.broadcast %cst_5 : f32 to vector<32x128xf32>
    %7 = arith.maximumf %5, %6 : vector<32x128xf32>
    %8 = vector.extract_strided_slice %7 {offsets = [0, 0], sizes = [8, 128], strides = [1, 1]} : vector<32x128xf32> to vector<8x128xf32>
    %9 = vector.extract_strided_slice %7 {offsets = [8, 0], sizes = [8, 128], strides = [1, 1]} : vector<32x128xf32> to vector<8x128xf32>
    %10 = arith.maximumf %8, %9 : vector<8x128xf32>
    %11 = vector.extract_strided_slice %7 {offsets = [16, 0], sizes = [8, 128], strides = [1, 1]} : vector<32x128xf32> to vector<8x128xf32>
    %12 = vector.extract_strided_slice %7 {offsets = [24, 0], sizes = [8, 128], strides = [1, 1]} : vector<32x128xf32> to vector<8x128xf32>
    %13 = arith.maximumf %11, %12 : vector<8x128xf32>
    %14 = arith.maximumf %10, %13 : vector<8x128xf32>
    %c0_6 = arith.constant 0 : index
    %c0_7 = arith.constant 0 : index
    %15 = vector.load %arg3[%c0_6, %c0_7] : memref<8x128xf32, #tpu.memory_space<vmem>>, vector<8x128xf32>
    tpu.vector_store %arg3[%c0_6, %c0_7], %14 {strides = array<i32>} : memref<8x128xf32, #tpu.memory_space<vmem>>, vector<8x128xf32>,
    return
  }
}

module attributes {stable_mosaic.version = 11 : i64} {
  func.func @_conv_bn_relu_pool_kernel(%arg0: memref<32x288xf32, #tpu.memory_space<vmem>>, %arg1: memref<288x128xf32, #tpu.memory_space<vmem>>, %arg2: memref<1x128xf32, #tpu.memory_space<vmem>>, %arg3: memref<8x128xf32, #tpu.memory_space<vmem>>) attributes {dimension_semantics = [], scalar_prefetch = 0 : i64, scratch_operands = 0 : i64, tpu.core_type = #tpu.core_type<tc>} {
    %c0 = arith.constant 0 : index
    %c0_0 = arith.constant 0 : index
    %0 = vector.load %arg0[%c0, %c0_0] : memref<32x288xf32, #tpu.memory_space<vmem>>, vector<32x288xf32>
    %c0_1 = arith.constant 0 : index
    %c0_2 = arith.constant 0 : index
    %1 = vector.load %arg1[%c0_1, %c0_2] : memref<288x128xf32, #tpu.memory_space<vmem>>, vector<288x128xf32>
    %cst = arith.constant dense<0.000000e+00> : vector<32x128xf32>
    %2 = tpu.matmul %0, %1, %cst {dimension_numbers = #tpu.dot_dimension_numbers<[1], [0], [0], [1], [0, 0, 1, 1], [], []>} : vector<32x288xf32>, vector<288x128xf32>, vector<32x128xf32> -> vector<32x128xf32>
    %c0_3 = arith.constant 0 : index
    %c0_4 = arith.constant 0 : index
    %3 = vector.load %arg2[%c0_3, %c0_4] : memref<1x128xf32, #tpu.memory_space<vmem>>, vector<1x128xf32>
    %4 = vector.broadcast %3 : vector<1x128xf32> to vector<32x128xf32>
    %5 = arith.addf %2, %4 : vector<32x128xf32>
    %cst_5 = arith.constant 0.000000e+00 : f32
    %6 = vector.broadcast %cst_5 : f32 to vector<32x128xf32>
    %7 = arith.maximumf %5, %6 : vector<32x128xf32>
    %8 = vector.extract_strided_slice %7 {offsets = [0, 0], sizes = [8, 128], strides = [1, 1]} : vector<32x128xf32> to vector<8x128xf32>
    %9 = vector.extract_strided_slice %7 {offsets = [8, 0], sizes = [8, 128], strides = [1, 1]} : vector<32x128xf32> to vector<8x128xf32>
    %10 = arith.maximumf %8, %9 : vector<8x128xf32>
    %11 = vector.extract_strided_slice %7 {offsets = [16, 0], sizes = [8, 128], strides = [1, 1]} : vector<32x128xf32> to vector<8x128xf32>
    %12 = vector.extract_strided_slice %7 {offsets = [24, 0], sizes = [8, 128], strides = [1, 1]} : vector<32x128xf32> to vector<8x128xf32>
    %13 = arith.maximumf %11, %12 : vector<8x128xf32>
    %14 = arith.maximumf %10, %13 : vector<8x128xf32>
    %c0_6 = arith.constant 0 : index
    %c0_7 = arith.constant 0 : index
    %15 = vector.load %arg3[%c0_6, %c0_7] : memref<8x128xf32, #tpu.memory_space<vmem>>, vector<8x128xf32>
    tpu.vector_store %arg3[%c0_6, %c0_7], %14 {strides = array<i32>} : memref<8x128xf32, #tpu.memory_space<vmem>>, vector<8x128xf32>,
    return
  }
}

</mosaic_0001>

<llo_original>
// kernel: convnet4_forward.5
$region0: #{convnet4_forward.5}
  #allocation0 [shape = 'u32[]', space=smem, size = 0x4, offset = 0x4, fixed_abs, tag = 'smem constant byte address 0x4 - core index']
  #allocation1 [shape = 'u32[72,128]{1,0:T(1,128)}', space=vmem, size = 0x9000, scoped, tag = 'internal scratch']
  %s0 = inlined_call_operand.vmem [shape: f32[128,72], index: 0, kind: input, shape index: {}]
  %s1 = inlined_call_operand.vmem [shape: f32[72,128], index: 1, kind: input, shape index: {}]
  %s2 = inlined_call_operand.vmem [shape: f32[1,128], index: 2, kind: input, shape index: {}]
  %s3 = inlined_call_operand.vmem [shape: f32[32,128], index: 3, kind: output, shape index: {}]
  %s4 = sld [smem:[#allocation0]]
  $region22: #{convnet4_forward.5} parent=0
    _
  %s6 = ssub.s32 1, %s4
  %s7 = scalar_select 0, %s6, %s4
  // Predicated region
  $region2: #{convnet4_forward.5} parent=0 // pred_check
    _
  $region3: #{convnet4_forward.5} parent=0 // pred_check_branch
    %9 = sbr.rel (0) target = $region5
  $region4: #{convnet4_forward.5} parent=0 // pred_region
    _
  $region5: #{convnet4_forward.5} parent=0 // pred_fallthru
    _
  // Predicated region
  $region6: #{convnet4_forward.5} parent=0 // pred_check
    _
  $region7: #{convnet4_forward.5} parent=0 // pred_check_branch
    %11 = sbr.rel (0) target = $region9
  $region8: #{convnet4_forward.5} parent=0 // pred_region
    _
  $region9: #{convnet4_forward.5} parent=0 // pred_fallthru
    _
  // Predicated region
  $region10: #{convnet4_forward.5} parent=0 // pred_check
    _
  $region11: #{convnet4_forward.5} parent=0 // pred_check_branch
    %13 = sbr.rel (0) target = $region13
  $region12: #{convnet4_forward.5} parent=0 // pred_region
    _
  $region13: #{convnet4_forward.5} parent=0 // pred_fallthru
    _
  %v14 = vld [vmem:[%s0] sm:$0xff]
  %v15 = vld [vmem:[%s0 + $0x8] sm:$0xff]
  %v16 = vld [vmem:[%s0 + $0x10] sm:$0xff]
  %v17 = vld [vmem:[%s0 + $0x18] sm:$0xff]
  %v18 = vld [vmem:[%s0 + $0x20] sm:$0xff]
  %v19 = vld [vmem:[%s0 + $0x28] sm:$0xff]
  %v20 = vld [vmem:[%s0 + $0x30] sm:$0xff]
  %v21 = vld [vmem:[%s0 + $0x38] sm:$0xff]
  %v22 = vld [vmem:[%s0 + $0x40] sm:$0xff]
  %v23 = vld [vmem:[%s0 + $0x48] sm:$0xff]
  %v24 = vld [vmem:[%s0 + $0x50] sm:$0xff]
  %v25 = vld [vmem:[%s0 + $0x58] sm:$0xff]
  %v26 = vld [vmem:[%s0 + $0x60] sm:$0xff]
  %v27 = vld [vmem:[%s0 + $0x68] sm:$0xff]
  %v28 = vld [vmem:[%s0 + $0x70] sm:$0xff]
  %v29 = vld [vmem:[%s0 + $0x78] sm:$0xff]
  %v30 = vld [vmem:[%s1] sm:$0xff]
  %v31 = vld [vmem:[%s1 + $0x8] sm:$0xff]
  %v32 = vld [vmem:[%s1 + $0x10] sm:$0xff]
  %v33 = vld [vmem:[%s1 + $0x18] sm:$0xff]
  %v34 = vld [vmem:[%s1 + $0x20] sm:$0xff]
  %v35 = vld [vmem:[%s1 + $0x28] sm:$0xff]
  %v36 = vld [vmem:[%s1 + $0x30] sm:$0xff]
  %v37 = vld [vmem:[%s1 + $0x38] sm:$0xff]
  %v38 = vld [vmem:[%s1 + $0x40] sm:$0xff]
  %v39 = vld [vmem:[%s2] sm:$0x1]
  %v41 = vperm.slane %v39, 0
  %vm43 = vcmask 588800
  %v45 = vsel %vm43, %v14, 0
  %v48 = vsel %vm43, %v15, 0
  %v51 = vsel %vm43, %v16, 0
  %v54 = vsel %vm43, %v17, 0
  %v57 = vsel %vm43, %v18, 0
  %v60 = vsel %vm43, %v19, 0
  %v63 = vsel %vm43, %v20, 0
  %v66 = vsel %vm43, %v21, 0
  %v69 = vsel %vm43, %v22, 0
  %v72 = vsel %vm43, %v23, 0
  %v75 = vsel %vm43, %v24, 0
  %v78 = vsel %vm43, %v25, 0
  %v81 = vsel %vm43, %v26, 0
  %v84 = vsel %vm43, %v27, 0
  %v87 = vsel %vm43, %v28, 0
  %v90 = vsel %vm43, %v29, 0
  %92 = vmatpush.msra.mxu0 0.0
  %93 = vmatpush.msra.mxu0 0.0
  %94 = vmatpush.msra.mxu0 0.0
  %95 = vmatpush.msra.mxu0 0.0
  %96 = vmatpush.msra.mxu0 0.0
  %97 = vmatpush.msra.mxu0 0.0
  %98 = vmatpush.msra.mxu0 0.0
  %99 = vmatpush.msra.mxu0 %v38
  %100 = vmatpush.msra.mxu0 %v37
  %101 = vmatpush.msra.mxu0 %v36
  %102 = vmatpush.msra.mxu0 %v35
  %103 = vmatpush.msra.mxu0 %v34
  %104 = vmatpush.msra.mxu0 %v33
  %105 = vmatpush.msra.mxu0 %v32
  %106 = vmatpush.msra.mxu0 %v31
  %107 = vmatpush.msra.mxu0 %v30
  %108 = vmatmul.f32.gmra.mxu0 %v45
  %v109 = vpop.f32.mrf.mxu0
  %v110 = vadd.f32 %v41, %v109
  %111 = vmatmul.f32.gmra.mxu0 %v48
  %v112 = vpop.f32.mrf.mxu0
  %v113 = vadd.f32 %v41, %v112
  %114 = vmatmul.f32.gmra.mxu0 %v51
  %v115 = vpop.f32.mrf.mxu0
  %v116 = vadd.f32 %v41, %v115
  %117 = vmatmul.f32.gmra.mxu0 %v54
  %v118 = vpop.f32.mrf.mxu0
  %v119 = vadd.f32 %v41, %v118
  %120 = vmatmul.f32.gmra.mxu0 %v57
  %v121 = vpop.f32.mrf.mxu0
  %v122 = vadd.f32 %v41, %v121
  %123 = vmatmul.f32.gmra.mxu0 %v60
  %v124 = vpop.f32.mrf.mxu0
  %v125 = vadd.f32 %v41, %v124
  %126 = vmatmul.f32.gmra.mxu0 %v63
  %v127 = vpop.f32.mrf.mxu0
  %v128 = vadd.f32 %v41, %v127
  %129 = vmatmul.f32.gmra.mxu0 %v66
  %v130 = vpop.f32.mrf.mxu0
  %v131 = vadd.f32 %v41, %v130
  %132 = vmatmul.f32.gmra.mxu0 %v69
  %v133 = vpop.f32.mrf.mxu0
  %v134 = vadd.f32 %v41, %v133
  %135 = vmatmul.f32.gmra.mxu0 %v72
  %v136 = vpop.f32.mrf.mxu0
  %v137 = vadd.f32 %v41, %v136
  %138 = vmatmul.f32.gmra.mxu0 %v75
  %v139 = vpop.f32.mrf.mxu0
  %v140 = vadd.f32 %v41, %v139
  %141 = vmatmul.f32.gmra.mxu0 %v78
  %v142 = vpop.f32.mrf.mxu0
  %v143 = vadd.f32 %v41, %v142
  %144 = vmatmul.f32.gmra.mxu0 %v81
  %v145 = vpop.f32.mrf.mxu0
  %v146 = vadd.f32 %v41, %v145
  %147 = vmatmul.f32.gmra.mxu0 %v84
  %v148 = vpop.f32.mrf.mxu0
  %v149 = vadd.f32 %v41, %v148
  %150 = vmatmul.f32.gmra.mxu0 %v87
  %v151 = vpop.f32.mrf.mxu0
  %v152 = vadd.f32 %v41, %v151
  %153 = vmatmul.f32.gmra.mxu0 %v90
  %v154 = vpop.f32.mrf.mxu0
  %v155 = vadd.f32 %v41, %v154
  %156 = vdwg.mxu0
  %v157 = vmax.f32 %v110, 0.0
  %v158 = vmax.f32 %v113, 0.0
  %v159 = vmax.f32 %v116, 0.0
  %v160 = vmax.f32 %v119, 0.0
  %v161 = vmax.f32 %v122, 0.0
  %v162 = vmax.f32 %v125, 0.0
  %v163 = vmax.f32 %v128, 0.0
  %v164 = vmax.f32 %v131, 0.0
  %v165 = vmax.f32 %v134, 0.0
  %v166 = vmax.f32 %v137, 0.0
  %v167 = vmax.f32 %v140, 0.0
  %v168 = vmax.f32 %v143, 0.0
  %v169 = vmax.f32 %v146, 0.0
  %v170 = vmax.f32 %v149, 0.0
  %v171 = vmax.f32 %v152, 0.0
  %v172 = vmax.f32 %v155, 0.0
  %v173 = vmax.f32 %v157, %v161
  %v174 = vmax.f32 %v158, %v162
  %v175 = vmax.f32 %v159, %v163
  %v176 = vmax.f32 %v160, %v164
  %v177 = vmax.f32 %v165, %v169
  %v178 = vmax.f32 %v166, %v170
  %v179 = vmax.f32 %v167, %v171
  %v180 = vmax.f32 %v168, %v172
  %v181 = vmax.f32 %v173, %v177
  %v182 = vmax.f32 %v174, %v178
  %v183 = vmax.f32 %v175, %v179
  %v184 = vmax.f32 %v176, %v180
  %185 = vst [vmem:[%s3] sm:$0xff] %v181
  %186 = vst [vmem:[%s3 + $0x8] sm:$0xff] %v182
  %187 = vst [vmem:[%s3 + $0x10] sm:$0xff] %v183
  %188 = vst [vmem:[%s3 + $0x18] sm:$0xff] %v184
  // Predicated region
  $region14: #{convnet4_forward.5} parent=0 // pred_check
    _
  $region15: #{convnet4_forward.5} parent=0 // pred_check_branch
    %190 = sbr.rel (0) target = $region17
  $region16: #{convnet4_forward.5} parent=0 // pred_region
    _
  $region17: #{convnet4_forward.5} parent=0 // pred_fallthru
    _
  // Predicated region
  $region18: #{convnet4_forward.5} parent=0 // pred_check
    _
  $region19: #{convnet4_forward.5} parent=0 // pred_check_branch
    %192 = sbr.rel (0) target = $region21
  $region20: #{convnet4_forward.5} parent=0 // pred_region
    _
  $region21: #{convnet4_forward.5} parent=0 // pred_fallthru
    _

// kernel: convnet4_forward.4
$region0: #{convnet4_forward.4}
  #allocation0 [shape = 'u32[]', space=smem, size = 0x4, offset = 0x4, fixed_abs, tag = 'smem constant byte address 0x4 - core index']
  #allocation1 [shape = 'u32[72,128]{1,0:T(1,128)}', space=vmem, size = 0x9000, scoped, tag = 'internal scratch']
  %s0 = inlined_call_operand.vmem [shape: f32[512,9], index: 0, kind: input, shape index: {}]
  %s1 = inlined_call_operand.vmem [shape: f32[9,128], index: 1, kind: input, shape index: {}]
  %s2 = inlined_call_operand.vmem [shape: f32[1,128], index: 2, kind: input, shape index: {}]
  %s3 = inlined_call_operand.vmem [shape: f32[128,128], index: 3, kind: output, shape index: {}]
  %s4 = sld [smem:[#allocation0]]
  $region22: #{convnet4_forward.4} parent=0
    _
  %s6 = ssub.s32 1, %s4
  %s7 = scalar_select 0, %s6, %s4
  // Predicated region
  $region2: #{convnet4_forward.4} parent=0 // pred_check
    _
  $region3: #{convnet4_forward.4} parent=0 // pred_check_branch
    %9 = sbr.rel (0) target = $region5
  $region4: #{convnet4_forward.4} parent=0 // pred_region
    _
  $region5: #{convnet4_forward.4} parent=0 // pred_fallthru
    _
  // Predicated region
  $region6: #{convnet4_forward.4} parent=0 // pred_check
    _
  $region7: #{convnet4_forward.4} parent=0 // pred_check_branch
    %11 = sbr.rel (0) target = $region9
  $region8: #{convnet4_forward.4} parent=0 // pred_region
    _
  $region9: #{convnet4_forward.4} parent=0 // pred_fallthru
    _
  // Predicated region
  $region10: #{convnet4_forward.4} parent=0 // pred_check
    _
  $region11: #{convnet4_forward.4} parent=0 // pred_check_branch
    %13 = sbr.rel (0) target = $region13
  $region12: #{convnet4_forward.4} parent=0 // pred_region
    _
  $region13: #{convnet4_forward.4} parent=0 // pred_fallthru
    _
  %v14 = vld [vmem:[%s0] sm:$0xff]
  %v15 = vld [vmem:[%s0 + $0x8] sm:$0xff]
  %v16 = vld [vmem:[%s0 + $0x10] sm:$0xff]
  %v17 = vld [vmem:[%s0 + $0x18] sm:$0xff]
  %v18 = vld [vmem:[%s0 + $0x20] sm:$0xff]
  %v19 = vld [vmem:[%s0 + $0x28] sm:$0xff]
  %v20 = vld [vmem:[%s0 + $0x30] sm:$0xff]
  %v21 = vld [vmem:[%s0 + $0x38] sm:$0xff]
  %v22 = vld [vmem:[%s0 + $0x40] sm:$0xff]
  %v23 = vld [vmem:[%s0 + $0x48] sm:$0xff]
  %v24 = vld [vmem:[%s0 + $0x50] sm:$0xff]
  %v25 = vld [vmem:[%s0 + $0x58] sm:$0xff]
  %v26 = vld [vmem:[%s0 + $0x60] sm:$0xff]
  %v27 = vld [vmem:[%s0 + $0x68] sm:$0xff]
  %v28 = vld [vmem:[%s0 + $0x70] sm:$0xff]
  %v29 = vld [vmem:[%s0 + $0x78] sm:$0xff]
  %v30 = vld [vmem:[%s0 + $0x80] sm:$0xff]
  %v31 = vld [vmem:[%s0 + $0x88] sm:$0xff]
  %v32 = vld [vmem:[%s0 + $0x90] sm:$0xff]
  %v33 = vld [vmem:[%s0 + $0x98] sm:$0xff]
  %v34 = vld [vmem:[%s0 + $0xa0] sm:$0xff]
  %v35 = vld [vmem:[%s0 + $0xa8] sm:$0xff]
  %v36 = vld [vmem:[%s0 + $0xb0] sm:$0xff]
  %v37 = vld [vmem:[%s0 + $0xb8] sm:$0xff]
  %v38 = vld [vmem:[%s0 + $0xc0] sm:$0xff]
  %v39 = vld [vmem:[%s0 + $0xc8] sm:$0xff]
  %v40 = vld [vmem:[%s0 + $0xd0] sm:$0xff]
  %v41 = vld [vmem:[%s0 + $0xd8] sm:$0xff]
  %v42 = vld [vmem:[%s0 + $0xe0] sm:$0xff]
  %v43 = vld [vmem:[%s0 + $0xe8] sm:$0xff]
  %v44 = vld [vmem:[%s0 + $0xf0] sm:$0xff]
  %v45 = vld [vmem:[%s0 + $0xf8] sm:$0xff]
  %v46 = vld [vmem:[%s0 + $0x100] sm:$0xff]
  %v47 = vld [vmem:[%s0 + $0x108] sm:$0xff]
  %v48 = vld [vmem:[%s0 + $0x110] sm:$0xff]
  %v49 = vld [vmem:[%s0 + $0x118] sm:$0xff]
  %v50 = vld [vmem:[%s0 + $0x120] sm:$0xff]
  %v51 = vld [vmem:[%s0 + $0x128] sm:$0xff]
  %v52 = vld [vmem:[%s0 + $0x130] sm:$0xff]
  %v53 = vld [vmem:[%s0 + $0x138] sm:$0xff]
  %v54 = vld [vmem:[%s0 + $0x140] sm:$0xff]
  %v55 = vld [vmem:[%s0 + $0x148] sm:$0xff]
  %v56 = vld [vmem:[%s0 + $0x150] sm:$0xff]
  %v57 = vld [vmem:[%s0 + $0x158] sm:$0xff]
  %v58 = vld [vmem:[%s0 + $0x160] sm:$0xff]
  %v59 = vld [vmem:[%s0 + $0x168] sm:$0xff]
  %v60 = vld [vmem:[%s0 + $0x170] sm:$0xff]
  %v61 = vld [vmem:[%s0 + $0x178] sm:$0xff]
  %v62 = vld [vmem:[%s0 + $0x180] sm:$0xff]
  %v63 = vld [vmem:[%s0 + $0x188] sm:$0xff]
  %v64 = vld [vmem:[%s0 + $0x190] sm:$0xff]
  %v65 = vld [vmem:[%s0 + $0x198] sm:$0xff]
  %v66 = vld [vmem:[%s0 + $0x1a0] sm:$0xff]
  %v67 = vld [vmem:[%s0 + $0x1a8] sm:$0xff]
  %v68 = vld [vmem:[%s0 + $0x1b0] sm:$0xff]
  %v69 = vld [vmem:[%s0 + $0x1b8] sm:$0xff]
  %v70 = vld [vmem:[%s0 + $0x1c0] sm:$0xff]
  %v71 = vld [vmem:[%s0 + $0x1c8] sm:$0xff]
  %v72 = vld [vmem:[%s0 + $0x1d0] sm:$0xff]
  %v73 = vld [vmem:[%s0 + $0x1d8] sm:$0xff]
  %v74 = vld [vmem:[%s0 + $0x1e0] sm:$0xff]
  %v75 = vld [vmem:[%s0 + $0x1e8] sm:$0xff]
  %v76 = vld [vmem:[%s0 + $0x1f0] sm:$0xff]
  %v77 = vld [vmem:[%s0 + $0x1f8] sm:$0xff]
  %v78 = vld [vmem:[%s1] sm:$0xff]
  %v79 = vld [vmem:[%s1 + $0x8] sm:$0x1]
  %v80 = vld [vmem:[%s2] sm:$0x1]
  %v82 = vperm.slane %v80, 0
  %vm84 = vcmask 72704
  %v86 = vsel %vm84, %v14, 0
  %v89 = vsel %vm84, %v15, 0
  %v92 = vsel %vm84, %v16, 0
  %v95 = vsel %vm84, %v17, 0
  %v98 = vsel %vm84, %v18, 0
  %v101 = vsel %vm84, %v19, 0
  %v104 = vsel %vm84, %v20, 0
  %v107 = vsel %vm84, %v21, 0
  %v110 = vsel %vm84, %v22, 0
  %v113 = vsel %vm84, %v23, 0
  %v116 = vsel %vm84, %v24, 0
  %v119 = vsel %vm84, %v25, 0
  %v122 = vsel %vm84, %v26, 0
  %v125 = vsel %vm84, %v27, 0
  %v128 = vsel %vm84, %v28, 0
  %v131 = vsel %vm84, %v29, 0
  %v134 = vsel %vm84, %v30, 0
  %v137 = vsel %vm84, %v31, 0
  %v140 = vsel %vm84, %v32, 0
  %v143 = vsel %vm84, %v33, 0
  %v146 = vsel %vm84, %v34, 0
  %v149 = vsel %vm84, %v35, 0
  %v152 = vsel %vm84, %v36, 0
  %v155 = vsel %vm84, %v37, 0
  %v158 = vsel %vm84, %v38, 0
  %v161 = vsel %vm84, %v39, 0
  %v164 = vsel %vm84, %v40, 0
  %v167 = vsel %vm84, %v41, 0
  %v170 = vsel %vm84, %v42, 0
  %v173 = vsel %vm84, %v43, 0
  %v176 = vsel %vm84, %v44, 0
  %v179 = vsel %vm84, %v45, 0
  %v182 = vsel %vm84, %v46, 0
  %v185 = vsel %vm84, %v47, 0
  %v188 = vsel %vm84, %v48, 0
  %v191 = vsel %vm84, %v49, 0
  %v194 = vsel %vm84, %v50, 0
  %v197 = vsel %vm84, %v51, 0
  %v200 = vsel %vm84, %v52, 0
  %v203 = vsel %vm84, %v53, 0
  %v206 = vsel %vm84, %v54, 0
  %v209 = vsel %vm84, %v55, 0
  %v212 = vsel %vm84, %v56, 0
  %v215 = vsel %vm84, %v57, 0
  %v218 = vsel %vm84, %v58, 0
  %v221 = vsel %vm84, %v59, 0
  %v224 = vsel %vm84, %v60, 0
  %v227 = vsel %vm84, %v61, 0
  %v230 = vsel %vm84, %v62, 0
  %v233 = vsel %vm84, %v63, 0
  %v236 = vsel %vm84, %v64, 0
  %v239 = vsel %vm84, %v65, 0
  %v242 = vsel %vm84, %v66, 0
  %v245 = vsel %vm84, %v67, 0
  %v248 = vsel %vm84, %v68, 0
  %v251 = vsel %vm84, %v69, 0
  %v254 = vsel %vm84, %v70, 0
  %v257 = vsel %vm84, %v71, 0
  %v260 = vsel %vm84, %v72, 0
  %v263 = vsel %vm84, %v73, 0
  %v266 = vsel %vm84, %v74, 0
  %v269 = vsel %vm84, %v75, 0
  %v272 = vsel %vm84, %v76, 0
  %v275 = vsel %vm84, %v77, 0
  %vm277 = vcmask 1040384
  %v279 = vsel %vm277, %v79, 0
  %281 = vmatpush.msra.mxu0 0.0
  %282 = vmatpush.msra.mxu0 0.0
  %283 = vmatpush.msra.mxu0 0.0
  %284 = vmatpush.msra.mxu0 0.0
  %285 = vmatpush.msra.mxu0 0.0
  %286 = vmatpush.msra.mxu0 0.0
  %287 = vmatpush.msra.mxu0 0.0
  %288 = vmatpush.msra.mxu0 0.0
  %289 = vmatpush.msra.mxu0 0.0
  %290 = vmatpush.msra.mxu0 0.0
  %291 = vmatpush.msra.mxu0 0.0
  %292 = vmatpush.msra.mxu0 0.0
  %293 = vmatpush.msra.mxu0 0.0
  %294 = vmatpush.msra.mxu0 0.0
  %295 = vmatpush.msra.mxu0 %v279
  %296 = vmatpush.msra.mxu0 %v78
  %297 = vmatmul.f32.gmra.mxu0 %v86
  %v298 = vpop.f32.mrf.mxu0
  %v299 = vadd.f32 %v82, %v298
  %300 = vmatmul.f32.gmra.mxu0 %v89
  %v301 = vpop.f32.mrf.mxu0
  %v302 = vadd.f32 %v82, %v301
  %303 = vmatmul.f32.gmra.mxu0 %v92
  %v304 = vpop.f32.mrf.mxu0
  %v305 = vadd.f32 %v82, %v304
  %306 = vmatmul.f32.gmra.mxu0 %v95
  %v307 = vpop.f32.mrf.mxu0
  %v308 = vadd.f32 %v82, %v307
  %309 = vmatmul.f32.gmra.mxu0 %v98
  %v310 = vpop.f32.mrf.mxu0
  %v311 = vadd.f32 %v82, %v310
  %312 = vmatmul.f32.gmra.mxu0 %v101
  %v313 = vpop.f32.mrf.mxu0
  %v314 = vadd.f32 %v82, %v313
  %315 = vmatmul.f32.gmra.mxu0 %v104
  %v316 = vpop.f32.mrf.mxu0
  %v317 = vadd.f32 %v82, %v316
  %318 = vmatmul.f32.gmra.mxu0 %v107
  %v319 = vpop.f32.mrf.mxu0
  %v320 = vadd.f32 %v82, %v319
  %321 = vmatmul.f32.gmra.mxu0 %v110
  %v322 = vpop.f32.mrf.mxu0
  %v323 = vadd.f32 %v82, %v322
  %324 = vmatmul.f32.gmra.mxu0 %v113
  %v325 = vpop.f32.mrf.mxu0
  %v326 = vadd.f32 %v82, %v325
  %327 = vmatmul.f32.gmra.mxu0 %v116
  %v328 = vpop.f32.mrf.mxu0
  %v329 = vadd.f32 %v82, %v328
  %330 = vmatmul.f32.gmra.mxu0 %v119
  %v331 = vpop.f32.mrf.mxu0
  %v332 = vadd.f32 %v82, %v331
  %333 = vmatmul.f32.gmra.mxu0 %v122
  %v334 = vpop.f32.mrf.mxu0
  %v335 = vadd.f32 %v82, %v334
  %336 = vmatmul.f32.gmra.mxu0 %v125
  %v337 = vpop.f32.mrf.mxu0
  %v338 = vadd.f32 %v82, %v337
  %339 = vmatmul.f32.gmra.mxu0 %v128
  %v340 = vpop.f32.mrf.mxu0
  %v341 = vadd.f32 %v82, %v340
  %342 = vmatmul.f32.gmra.mxu0 %v131
  %v343 = vpop.f32.mrf.mxu0
  %v344 = vadd.f32 %v82, %v343
  %345 = vmatmul.f32.gmra.mxu0 %v134
  %v346 = vpop.f32.mrf.mxu0
  %v347 = vadd.f32 %v82, %v346
  %348 = vmatmul.f32.gmra.mxu0 %v137
  %v349 = vpop.f32.mrf.mxu0
  %v350 = vadd.f32 %v82, %v349
  %351 = vmatmul.f32.gmra.mxu0 %v140
  %v352 = vpop.f32.mrf.mxu0
  %v353 = vadd.f32 %v82, %v352
  %354 = vmatmul.f32.gmra.mxu0 %v143
  %v355 = vpop.f32.mrf.mxu0
  %v356 = vadd.f32 %v82, %v355
  %357 = vmatmul.f32.gmra.mxu0 %v146
  %v358 = vpop.f32.mrf.mxu0
  %v359 = vadd.f32 %v82, %v358
  %360 = vmatmul.f32.gmra.mxu0 %v149
  %v361 = vpop.f32.mrf.mxu0
  %v362 = vadd.f32 %v82, %v361
  %363 = vmatmul.f32.gmra.mxu0 %v152
  %v364 = vpop.f32.mrf.mxu0
  %v365 = vadd.f32 %v82, %v364
  %366 = vmatmul.f32.gmra.mxu0 %v155
  %v367 = vpop.f32.mrf.mxu0
  %v368 = vadd.f32 %v82, %v367
  %369 = vmatmul.f32.gmra.mxu0 %v158
  %v370 = vpop.f32.mrf.mxu0
  %v371 = vadd.f32 %v82, %v370
  %372 = vmatmul.f32.gmra.mxu0 %v161
  %v373 = vpop.f32.mrf.mxu0
  %v374 = vadd.f32 %v82, %v373
  %375 = vmatmul.f32.gmra.mxu0 %v164
  %v376 = vpop.f32.mrf.mxu0
  %v377 = vadd.f32 %v82, %v376
  %378 = vmatmul.f32.gmra.mxu0 %v167
  %v379 = vpop.f32.mrf.mxu0
  %v380 = vadd.f32 %v82, %v379
  %381 = vmatmul.f32.gmra.mxu0 %v170
  %v382 = vpop.f32.mrf.mxu0
  %v383 = vadd.f32 %v82, %v382
  %384 = vmatmul.f32.gmra.mxu0 %v173
  %v385 = vpop.f32.mrf.mxu0
  %v386 = vadd.f32 %v82, %v385
  %387 = vmatmul.f32.gmra.mxu0 %v176
  %v388 = vpop.f32.mrf.mxu0
  %v389 = vadd.f32 %v82, %v388
  %390 = vmatmul.f32.gmra.mxu0 %v179
  %v391 = vpop.f32.mrf.mxu0
  %v392 = vadd.f32 %v82, %v391
  %393 = vmatmul.f32.gmra.mxu0 %v182
  %v394 = vpop.f32.mrf.mxu0
  %v395 = vadd.f32 %v82, %v394
  %396 = vmatmul.f32.gmra.mxu0 %v185
  %v397 = vpop.f32.mrf.mxu0
  %v398 = vadd.f32 %v82, %v397
  %399 = vmatmul.f32.gmra.mxu0 %v188
  %v400 = vpop.f32.mrf.mxu0
  %v401 = vadd.f32 %v82, %v400
  %402 = vmatmul.f32.gmra.mxu0 %v191
  %v403 = vpop.f32.mrf.mxu0
  %v404 = vadd.f32 %v82, %v403
  %405 = vmatmul.f32.gmra.mxu0 %v194
  %v406 = vpop.f32.mrf.mxu0
  %v407 = vadd.f32 %v82, %v406
  %408 = vmatmul.f32.gmra.mxu0 %v197
  %v409 = vpop.f32.mrf.mxu0
  %v410 = vadd.f32 %v82, %v409
  %411 = vmatmul.f32.gmra.mxu0 %v200
  %v412 = vpop.f32.mrf.mxu0
  %v413 = vadd.f32 %v82, %v412
  %414 = vmatmul.f32.gmra.mxu0 %v203
  %v415 = vpop.f32.mrf.mxu0
  %v416 = vadd.f32 %v82, %v415
  %417 = vmatmul.f32.gmra.mxu0 %v206
  %v418 = vpop.f32.mrf.mxu0
  %v419 = vadd.f32 %v82, %v418
  %420 = vmatmul.f32.gmra.mxu0 %v209
  %v421 = vpop.f32.mrf.mxu0
  %v422 = vadd.f32 %v82, %v421
  %423 = vmatmul.f32.gmra.mxu0 %v212
  %v424 = vpop.f32.mrf.mxu0
  %v425 = vadd.f32 %v82, %v424
  %426 = vmatmul.f32.gmra.mxu0 %v215
  %v427 = vpop.f32.mrf.mxu0
  %v428 = vadd.f32 %v82, %v427
  %429 = vmatmul.f32.gmra.mxu0 %v218
  %v430 = vpop.f32.mrf.mxu0
  %v431 = vadd.f32 %v82, %v430
  %432 = vmatmul.f32.gmra.mxu0 %v221
  %v433 = vpop.f32.mrf.mxu0
  %v434 = vadd.f32 %v82, %v433
  %435 = vmatmul.f32.gmra.mxu0 %v224
  %v436 = vpop.f32.mrf.mxu0
  %v437 = vadd.f32 %v82, %v436
  %438 = vmatmul.f32.gmra.mxu0 %v227
  %v439 = vpop.f32.mrf.mxu0
  %v440 = vadd.f32 %v82, %v439
  %441 = vmatmul.f32.gmra.mxu0 %v230
  %v442 = vpop.f32.mrf.mxu0
  %v443 = vadd.f32 %v82, %v442
  %444 = vmatmul.f32.gmra.mxu0 %v233
  %v445 = vpop.f32.mrf.mxu0
  %v446 = vadd.f32 %v82, %v445
  %447 = vmatmul.f32.gmra.mxu0 %v236
  %v448 = vpop.f32.mrf.mxu0
  %v449 = vadd.f32 %v82, %v448
  %450 = vmatmul.f32.gmra.mxu0 %v239
  %v451 = vpop.f32.mrf.mxu0
  %v452 = vadd.f32 %v82, %v451
  %453 = vmatmul.f32.gmra.mxu0 %v242
  %v454 = vpop.f32.mrf.mxu0
  %v455 = vadd.f32 %v82, %v454
  %456 = vmatmul.f32.gmra.mxu0 %v245
  %v457 = vpop.f32.mrf.mxu0
  %v458 = vadd.f32 %v82, %v457
  %459 = vmatmul.f32.gmra.mxu0 %v248
  %v460 = vpop.f32.mrf.mxu0
  %v461 = vadd.f32 %v82, %v460
  %462 = vmatmul.f32.gmra.mxu0 %v251
  %v463 = vpop.f32.mrf.mxu0
  %v464 = vadd.f32 %v82, %v463
  %465 = vmatmul.f32.gmra.mxu0 %v254
  %v466 = vpop.f32.mrf.mxu0
  %v467 = vadd.f32 %v82, %v466
  %468 = vmatmul.f32.gmra.mxu0 %v257
  %v469 = vpop.f32.mrf.mxu0
  %v470 = vadd.f32 %v82, %v469
  %471 = vmatmul.f32.gmra.mxu0 %v260
  %v472 = vpop.f32.mrf.mxu0
  %v473 = vadd.f32 %v82, %v472
  %474 = vmatmul.f32.gmra.mxu0 %v263
  %v475 = vpop.f32.mrf.mxu0
  %v476 = vadd.f32 %v82, %v475
  %477 = vmatmul.f32.gmra.mxu0 %v266
  %v478 = vpop.f32.mrf.mxu0
  %v479 = vadd.f32 %v82, %v478
  %480 = vmatmul.f32.gmra.mxu0 %v269
  %v481 = vpop.f32.mrf.mxu0
  %v482 = vadd.f32 %v82, %v481
  %483 = vmatmul.f32.gmra.mxu0 %v272
  %v484 = vpop.f32.mrf.mxu0
  %v485 = vadd.f32 %v82, %v484
  %486 = vmatmul.f32.gmra.mxu0 %v275
  %v487 = vpop.f32.mrf.mxu0
  %v488 = vadd.f32 %v82, %v487
  %489 = vdwg.mxu0
  %v490 = vmax.f32 %v299, 0.0
  %v491 = vmax.f32 %v302, 0.0
  %v492 = vmax.f32 %v305, 0.0
  %v493 = vmax.f32 %v308, 0.0
  %v494 = vmax.f32 %v311, 0.0
  %v495 = vmax.f32 %v314, 0.0
  %v496 = vmax.f32 %v317, 0.0
  %v497 = vmax.f32 %v320, 0.0
  %v498 = vmax.f32 %v323, 0.0
  %v499 = vmax.f32 %v326, 0.0
  %v500 = vmax.f32 %v329, 0.0
  %v501 = vmax.f32 %v332, 0.0
  %v502 = vmax.f32 %v335, 0.0
  %v503 = vmax.f32 %v338, 0.0
  %v504 = vmax.f32 %v341, 0.0
  %v505 = vmax.f32 %v344, 0.0
  %v506 = vmax.f32 %v347, 0.0
  %v507 = vmax.f32 %v350, 0.0
  %v508 = vmax.f32 %v353, 0.0
  %v509 = vmax.f32 %v356, 0.0
  %v510 = vmax.f32 %v359, 0.0
  %v511 = vmax.f32 %v362, 0.0
  %v512 = vmax.f32 %v365, 0.0
  %v513 = vmax.f32 %v368, 0.0
  %v514 = vmax.f32 %v371, 0.0
  %v515 = vmax.f32 %v374, 0.0
  %v516 = vmax.f32 %v377, 0.0
  %v517 = vmax.f32 %v380, 0.0
  %v518 = vmax.f32 %v383, 0.0
  %v519 = vmax.f32 %v386, 0.0
  %v520 = vmax.f32 %v389, 0.0
  %v521 = vmax.f32 %v392, 0.0
  %v522 = vmax.f32 %v395, 0.0
  %v523 = vmax.f32 %v398, 0.0
  %v524 = vmax.f32 %v401, 0.0
  %v525 = vmax.f32 %v404, 0.0
  %v526 = vmax.f32 %v407, 0.0
  %v527 = vmax.f32 %v410, 0.0
  %v528 = vmax.f32 %v413, 0.0
  %v529 = vmax.f32 %v416, 0.0
  %v530 = vmax.f32 %v419, 0.0
  %v531 = vmax.f32 %v422, 0.0
  %v532 = vmax.f32 %v425, 0.0
  %v533 = vmax.f32 %v428, 0.0
  %v534 = vmax.f32 %v431, 0.0
  %v535 = vmax.f32 %v434, 0.0
  %v536 = vmax.f32 %v437, 0.0
  %v537 = vmax.f32 %v440, 0.0
  %v538 = vmax.f32 %v443, 0.0
  %v539 = vmax.f32 %v446, 0.0
  %v540 = vmax.f32 %v449, 0.0
  %v541 = vmax.f32 %v452, 0.0
  %v542 = vmax.f32 %v455, 0.0
  %v543 = vmax.f32 %v458, 0.0
  %v544 = vmax.f32 %v461, 0.0
  %v545 = vmax.f32 %v464, 0.0
  %v546 = vmax.f32 %v467, 0.0
  %v547 = vmax.f32 %v470, 0.0
  %v548 = vmax.f32 %v473, 0.0
  %v549 = vmax.f32 %v476, 0.0
  %v550 = vmax.f32 %v479, 0.0
  %v551 = vmax.f32 %v482, 0.0
  %v552 = vmax.f32 %v485, 0.0
  %v553 = vmax.f32 %v488, 0.0
  %v554 = vmax.f32 %v490, %v506
  %v555 = vmax.f32 %v491, %v507
  %v556 = vmax.f32 %v492, %v508
  %v557 = vmax.f32 %v493, %v509
  %v558 = vmax.f32 %v494, %v510
  %v559 = vmax.f32 %v495, %v511
  %v560 = vmax.f32 %v496, %v512
  %v561 = vmax.f32 %v497, %v513
  %v562 = vmax.f32 %v498, %v514
  %v563 = vmax.f32 %v499, %v515
  %v564 = vmax.f32 %v500, %v516
  %v565 = vmax.f32 %v501, %v517
  %v566 = vmax.f32 %v502, %v518
  %v567 = vmax.f32 %v503, %v519
  %v568 = vmax.f32 %v504, %v520
  %v569 = vmax.f32 %v505, %v521
  %v570 = vmax.f32 %v522, %v538
  %v571 = vmax.f32 %v523, %v539
  %v572 = vmax.f32 %v524, %v540
  %v573 = vmax.f32 %v525, %v541
  %v574 = vmax.f32 %v526, %v542
  %v575 = vmax.f32 %v527, %v543
  %v576 = vmax.f32 %v528, %v544
  %v577 = vmax.f32 %v529, %v545
  %v578 = vmax.f32 %v530, %v546
  %v579 = vmax.f32 %v531, %v547
  %v580 = vmax.f32 %v532, %v548
  %v581 = vmax.f32 %v533, %v549
  %v582 = vmax.f32 %v534, %v550
  %v583 = vmax.f32 %v535, %v551
  %v584 = vmax.f32 %v536, %v552
  %v585 = vmax.f32 %v537, %v553
  %v586 = vmax.f32 %v554, %v570
  %v587 = vmax.f32 %v555, %v571
  %v588 = vmax.f32 %v556, %v572
  %v589 = vmax.f32 %v557, %v573
  %v590 = vmax.f32 %v558, %v574
  %v591 = vmax.f32 %v559, %v575
  %v592 = vmax.f32 %v560, %v576
  %v593 = vmax.f32 %v561, %v577
  %v594 = vmax.f32 %v562, %v578
  %v595 = vmax.f32 %v563, %v579
  %v596 = vmax.f32 %v564, %v580
  %v597 = vmax.f32 %v565, %v581
  %v598 = vmax.f32 %v566, %v582
  %v599 = vmax.f32 %v567, %v583
  %v600 = vmax.f32 %v568, %v584
  %v601 = vmax.f32 %v569, %v585
  %602 = vst [vmem:[%s3] sm:$0xff] %v586
  %603 = vst [vmem:[%s3 + $0x8] sm:$0xff] %v587
  %604 = vst [vmem:[%s3 + $0x10] sm:$0xff] %v588
  %605 = vst [vmem:[%s3 + $0x18] sm:$0xff] %v589
  %606 = vst [vmem:[%s3 + $0x20] sm:$0xff] %v590
  %607 = vst [vmem:[%s3 + $0x28] sm:$0xff] %v591
  %608 = vst [vmem:[%s3 + $0x30] sm:$0xff] %v592
  %609 = vst [vmem:[%s3 + $0x38] sm:$0xff] %v593
  %610 = vst [vmem:[%s3 + $0x40] sm:$0xff] %v594
  %611 = vst [vmem:[%s3 + $0x48] sm:$0xff] %v595
  %612 = vst [vmem:[%s3 + $0x50] sm:$0xff] %v596
  %613 = vst [vmem:[%s3 + $0x58] sm:$0xff] %v597
  %614 = vst [vmem:[%s3 + $0x60] sm:$0xff] %v598
  %615 = vst [vmem:[%s3 + $0x68] sm:$0xff] %v599
  %616 = vst [vmem:[%s3 + $0x70] sm:$0xff] %v600
  %617 = vst [vmem:[%s3 + $0x78] sm:$0xff] %v601
  // Predicated region
  $region14: #{convnet4_forward.4} parent=0 // pred_check
    _
  $region15: #{convnet4_forward.4} parent=0 // pred_check_branch
    %619 = sbr.rel (0) target = $region17
  $region16: #{convnet4_forward.4} parent=0 // pred_region
    _
  $region17: #{convnet4_forward.4} parent=0 // pred_fallthru
    _
  // Predicated region
  $region18: #{convnet4_forward.4} parent=0 // pred_check
    _
  $region19: #{convnet4_forward.4} parent=0 // pred_check_branch
    %621 = sbr.rel (0) target = $region21
  $region20: #{convnet4_forward.4} parent=0 // pred_region
    _
  $region21: #{convnet4_forward.4} parent=0 // pred_fallthru
    _

// kernel: convnet4_forward.6
$region0: #{convnet4_forward.6}
  #allocation0 [shape = 'u32[]', space=smem, size = 0x4, offset = 0x4, fixed_abs, tag = 'smem constant byte address 0x4 - core index']
  #allocation1 [shape = 'u32[72,128]{1,0:T(1,128)}', space=vmem, size = 0x9000, scoped, tag = 'internal scratch']
  %s0 = inlined_call_operand.vmem [shape: f32[32,144], index: 0, kind: input, shape index: {}]
  %s1 = inlined_call_operand.vmem [shape: f32[144,128], index: 1, kind: input, shape index: {}]
  %s2 = inlined_call_operand.vmem [shape: f32[1,128], index: 2, kind: input, shape index: {}]
  %s3 = inlined_call_operand.vmem [shape: f32[8,128], index: 3, kind: output, shape index: {}]
  %s4 = sld [smem:[#allocation0]]
  $region22: #{convnet4_forward.6} parent=0
    _
  %s6 = ssub.s32 1, %s4
  %s7 = scalar_select 0, %s6, %s4
  // Predicated region
  $region2: #{convnet4_forward.6} parent=0 // pred_check
    _
  $region3: #{convnet4_forward.6} parent=0 // pred_check_branch
    %9 = sbr.rel (0) target = $region5
  $region4: #{convnet4_forward.6} parent=0 // pred_region
    _
  $region5: #{convnet4_forward.6} parent=0 // pred_fallthru
    _
  // Predicated region
  $region6: #{convnet4_forward.6} parent=0 // pred_check
    _
  $region7: #{convnet4_forward.6} parent=0 // pred_check_branch
    %11 = sbr.rel (0) target = $region9
  $region8: #{convnet4_forward.6} parent=0 // pred_region
    _
  $region9: #{convnet4_forward.6} parent=0 // pred_fallthru
    _
  // Predicated region
  $region10: #{convnet4_forward.6} parent=0 // pred_check
    _
  $region11: #{convnet4_forward.6} parent=0 // pred_check_branch
    %13 = sbr.rel (0) target = $region13
  $region12: #{convnet4_forward.6} parent=0 // pred_region
    _
  $region13: #{convnet4_forward.6} parent=0 // pred_fallthru
    _
  %v14 = vld [vmem:[%s0] sm:$0xff]
  %v15 = vld [vmem:[%s0 + $0x8] sm:$0xff]
  %v16 = vld [vmem:[%s0 + $0x10] sm:$0xff]
  %v17 = vld [vmem:[%s0 + $0x18] sm:$0xff]
  %v18 = vld [vmem:[%s0 + $0x20] sm:$0xff]
  %v19 = vld [vmem:[%s0 + $0x28] sm:$0xff]
  %v20 = vld [vmem:[%s0 + $0x30] sm:$0xff]
  %v21 = vld [vmem:[%s0 + $0x38] sm:$0xff]
  %v22 = vld [vmem:[%s1] sm:$0xff]
  %v23 = vld [vmem:[%s1 + $0x8] sm:$0xff]
  %v24 = vld [vmem:[%s1 + $0x10] sm:$0xff]
  %v25 = vld [vmem:[%s1 + $0x18] sm:$0xff]
  %v26 = vld [vmem:[%s1 + $0x20] sm:$0xff]
  %v27 = vld [vmem:[%s1 + $0x28] sm:$0xff]
  %v28 = vld [vmem:[%s1 + $0x30] sm:$0xff]
  %v29 = vld [vmem:[%s1 + $0x38] sm:$0xff]
  %v30 = vld [vmem:[%s1 + $0x40] sm:$0xff]
  %v31 = vld [vmem:[%s1 + $0x48] sm:$0xff]
  %v32 = vld [vmem:[%s1 + $0x50] sm:$0xff]
  %v33 = vld [vmem:[%s1 + $0x58] sm:$0xff]
  %v34 = vld [vmem:[%s1 + $0x60] sm:$0xff]
  %v35 = vld [vmem:[%s1 + $0x68] sm:$0xff]
  %v36 = vld [vmem:[%s1 + $0x70] sm:$0xff]
  %v37 = vld [vmem:[%s1 + $0x78] sm:$0xff]
  %v38 = vld [vmem:[%s1 + $0x80] sm:$0xff]
  %v39 = vld [vmem:[%s1 + $0x88] sm:$0xff]
  %v40 = vld [vmem:[%s2] sm:$0x1]
  %v42 = vperm.slane %v40, 0
  %vm44 = vcmask 130048
  %v46 = vsel %vm44, %v15, 0
  %v49 = vsel %vm44, %v17, 0
  %v52 = vsel %vm44, %v19, 0
  %v55 = vsel %vm44, %v21, 0
  %57 = vmatpush.msra.mxu0 %v37
  %58 = vmatpush.msra.mxu0 %v36
  %59 = vmatpush.msra.mxu0 %v35
  %60 = vmatpush.msra.mxu0 %v34
  %61 = vmatpush.msra.mxu0 %v33
  %62 = vmatpush.msra.mxu0 %v32
  %63 = vmatpush.msra.mxu0 %v31
  %64 = vmatpush.msra.mxu0 %v30
  %65 = vmatpush.msra.mxu0 %v29
  %66 = vmatpush.msra.mxu0 %v28
  %67 = vmatpush.msra.mxu0 %v27
  %68 = vmatpush.msra.mxu0 %v26
  %69 = vmatpush.msra.mxu0 %v25
  %70 = vmatpush.msra.mxu0 %v24
  %71 = vmatpush.msra.mxu0 %v23
  %72 = vmatpush.msra.mxu0 %v22
  %73 = vmatmul.f32.gmra.mxu0 %v14
  %v74 = vpop.f32.mrf.mxu0
  %v75 = vadd.f32 %v42, %v74
  %76 = vmatmul.f32.gmra.mxu0 %v16
  %v77 = vpop.f32.mrf.mxu0
  %v78 = vadd.f32 %v42, %v77
  %79 = vmatmul.f32.gmra.mxu0 %v18
  %v80 = vpop.f32.mrf.mxu0
  %v81 = vadd.f32 %v42, %v80
  %82 = vmatmul.f32.gmra.mxu0 %v20
  %v83 = vpop.f32.mrf.mxu0
  %v84 = vadd.f32 %v42, %v83
  %85 = vdwg.mxu0
  %86 = vmatpush.msra.mxu0 0.0
  %87 = vmatpush.msra.mxu0 0.0
  %88 = vmatpush.msra.mxu0 0.0
  %89 = vmatpush.msra.mxu0 0.0
  %90 = vmatpush.msra.mxu0 0.0
  %91 = vmatpush.msra.mxu0 0.0
  %92 = vmatpush.msra.mxu0 0.0
  %93 = vmatpush.msra.mxu0 0.0
  %94 = vmatpush.msra.mxu0 0.0
  %95 = vmatpush.msra.mxu0 0.0
  %96 = vmatpush.msra.mxu0 0.0
  %97 = vmatpush.msra.mxu0 0.0
  %98 = vmatpush.msra.mxu0 0.0
  %99 = vmatpush.msra.mxu0 0.0
  %100 = vmatpush.msra.mxu0 %v39
  %101 = vmatpush.msra.mxu0 %v38
  %102 = vmatmul.f32.gmra.mxu0 %v46
  %v103 = vpop.f32.mrf.mxu0
  %v104 = vadd.f32 %v75, %v103
  %105 = vmatmul.f32.gmra.mxu0 %v49
  %v106 = vpop.f32.mrf.mxu0
  %v107 = vadd.f32 %v78, %v106
  %108 = vmatmul.f32.gmra.mxu0 %v52
  %v109 = vpop.f32.mrf.mxu0
  %v110 = vadd.f32 %v81, %v109
  %111 = vmatmul.f32.gmra.mxu0 %v55
  %v112 = vpop.f32.mrf.mxu0
  %v113 = vadd.f32 %v84, %v112
  %114 = vdwg.mxu0
  %v115 = vmax.f32 %v104, 0.0
  %v116 = vmax.f32 %v107, 0.0
  %v117 = vmax.f32 %v110, 0.0
  %v118 = vmax.f32 %v113, 0.0
  %v119 = vmax.f32 %v115, %v116
  %v120 = vmax.f32 %v117, %v118
  %v121 = vmax.f32 %v119, %v120
  %122 = vst [vmem:[%s3] sm:$0xff] %v121
  // Predicated region
  $region14: #{convnet4_forward.6} parent=0 // pred_check
    _
  $region15: #{convnet4_forward.6} parent=0 // pred_check_branch
    %124 = sbr.rel (0) target = $region17
  $region16: #{convnet4_forward.6} parent=0 // pred_region
    _
  $region17: #{convnet4_forward.6} parent=0 // pred_fallthru
    _
  // Predicated region
  $region18: #{convnet4_forward.6} parent=0 // pred_check
    _
  $region19: #{convnet4_forward.6} parent=0 // pred_check_branch
    %126 = sbr.rel (0) target = $region21
  $region20: #{convnet4_forward.6} parent=0 // pred_region
    _
  $region21: #{convnet4_forward.6} parent=0 // pred_fallthru
    _

// kernel: convnet4_forward.7
$region0: #{convnet4_forward.7}
  #allocation0 [shape = 'u32[]', space=smem, size = 0x4, offset = 0x4, fixed_abs, tag = 'smem constant byte address 0x4 - core index']
  #allocation1 [shape = 'u32[72,128]{1,0:T(1,128)}', space=vmem, size = 0x9000, scoped, tag = 'internal scratch']
  %s0 = inlined_call_operand.vmem [shape: f32[32,288], index: 0, kind: input, shape index: {}]
  %s1 = inlined_call_operand.vmem [shape: f32[288,128], index: 1, kind: input, shape index: {}]
  %s2 = inlined_call_operand.vmem [shape: f32[1,128], index: 2, kind: input, shape index: {}]
  %s3 = inlined_call_operand.vmem [shape: f32[8,128], index: 3, kind: output, shape index: {}]
  %s4 = sld [smem:[#allocation0]]
  $region22: #{convnet4_forward.7} parent=0
    _
  %s6 = ssub.s32 1, %s4
  %s7 = scalar_select 0, %s6, %s4
  // Predicated region
  $region2: #{convnet4_forward.7} parent=0 // pred_check
    _
  $region3: #{convnet4_forward.7} parent=0 // pred_check_branch
    %9 = sbr.rel (0) target = $region5
  $region4: #{convnet4_forward.7} parent=0 // pred_region
    _
  $region5: #{convnet4_forward.7} parent=0 // pred_fallthru
    _
  // Predicated region
  $region6: #{convnet4_forward.7} parent=0 // pred_check
    _
  $region7: #{convnet4_forward.7} parent=0 // pred_check_branch
    %11 = sbr.rel (0) target = $region9
  $region8: #{convnet4_forward.7} parent=0 // pred_region
    _
  $region9: #{convnet4_forward.7} parent=0 // pred_fallthru
    _
  // Predicated region
  $region10: #{convnet4_forward.7} parent=0 // pred_check
    _
  $region11: #{convnet4_forward.7} parent=0 // pred_check_branch
    %13 = sbr.rel (0) target = $region13
  $region12: #{convnet4_forward.7} parent=0 // pred_region
    _
  $region13: #{convnet4_forward.7} parent=0 // pred_fallthru
    _
  %v14 = vld [vmem:[%s0] sm:$0xff]
  %v15 = vld [vmem:[%s0 + $0x8] sm:$0xff]
  %v16 = vld [vmem:[%s0 + $0x10] sm:$0xff]
  %v17 = vld [vmem:[%s0 + $0x18] sm:$0xff]
  %v18 = vld [vmem:[%s0 + $0x20] sm:$0xff]
  %v19 = vld [vmem:[%s0 + $0x28] sm:$0xff]
  %v20 = vld [vmem:[%s0 + $0x30] sm:$0xff]
  %v21 = vld [vmem:[%s0 + $0x38] sm:$0xff]
  %v22 = vld [vmem:[%s0 + $0x40] sm:$0xff]
  %v23 = vld [vmem:[%s0 + $0x48] sm:$0xff]
  %v24 = vld [vmem:[%s0 + $0x50] sm:$0xff]
  %v25 = vld [vmem:[%s0 + $0x58] sm:$0xff]
  %v26 = vld [vmem:[%s1] sm:$0xff]
  %v27 = vld [vmem:[%s1 + $0x8] sm:$0xff]
  %v28 = vld [vmem:[%s1 + $0x10] sm:$0xff]
  %v29 = vld [vmem:[%s1 + $0x18] sm:$0xff]
  %v30 = vld [vmem:[%s1 + $0x20] sm:$0xff]
  %v31 = vld [vmem:[%s1 + $0x28] sm:$0xff]
  %v32 = vld [vmem:[%s1 + $0x30] sm:$0xff]
  %v33 = vld [vmem:[%s1 + $0x38] sm:$0xff]
  %v34 = vld [vmem:[%s1 + $0x40] sm:$0xff]
  %v35 = vld [vmem:[%s1 + $0x48] sm:$0xff]
  %v36 = vld [vmem:[%s1 + $0x50] sm:$0xff]
  %v37 = vld [vmem:[%s1 + $0x58] sm:$0xff]
  %v38 = vld [vmem:[%s1 + $0x60] sm:$0xff]
  %v39 = vld [vmem:[%s1 + $0x68] sm:$0xff]
  %v40 = vld [vmem:[%s1 + $0x70] sm:$0xff]
  %v41 = vld [vmem:[%s1 + $0x78] sm:$0xff]
  %v42 = vld [vmem:[%s1 + $0x80] sm:$0xff]
  %v43 = vld [vmem:[%s1 + $0x88] sm:$0xff]
  %v44 = vld [vmem:[%s1 + $0x90] sm:$0xff]
  %v45 = vld [vmem:[%s1 + $0x98] sm:$0xff]
  %v46 = vld [vmem:[%s1 + $0xa0] sm:$0xff]
  %v47 = vld [vmem:[%s1 + $0xa8] sm:$0xff]
  %v48 = vld [vmem:[%s1 + $0xb0] sm:$0xff]
  %v49 = vld [vmem:[%s1 + $0xb8] sm:$0xff]
  %v50 = vld [vmem:[%s1 + $0xc0] sm:$0xff]
  %v51 = vld [vmem:[%s1 + $0xc8] sm:$0xff]
  %v52 = vld [vmem:[%s1 + $0xd0] sm:$0xff]
  %v53 = vld [vmem:[%s1 + $0xd8] sm:$0xff]
  %v54 = vld [vmem:[%s1 + $0xe0] sm:$0xff]
  %v55 = vld [vmem:[%s1 + $0xe8] sm:$0xff]
  %v56 = vld [vmem:[%s1 + $0xf0] sm:$0xff]
  %v57 = vld [vmem:[%s1 + $0xf8] sm:$0xff]
  %v58 = vld [vmem:[%s1 + $0x100] sm:$0xff]
  %v59 = vld [vmem:[%s1 + $0x108] sm:$0xff]
  %v60 = vld [vmem:[%s1 + $0x110] sm:$0xff]
  %v61 = vld [vmem:[%s1 + $0x118] sm:$0xff]
  %v62 = vld [vmem:[%s2] sm:$0x1]
  %v64 = vperm.slane %v62, 0
  %vm66 = vcmask 261120
  %v68 = vsel %vm66, %v16, 0
  %v71 = vsel %vm66, %v19, 0
  %v74 = vsel %vm66, %v22, 0
  %v77 = vsel %vm66, %v25, 0
  %79 = vmatpush.msra.mxu0 %v41
  %80 = vmatpush.msra.mxu0 %v40
  %81 = vmatpush.msra.mxu0 %v39
  %82 = vmatpush.msra.mxu0 %v38
  %83 = vmatpush.msra.mxu0 %v37
  %84 = vmatpush.msra.mxu0 %v36
  %85 = vmatpush.msra.mxu0 %v35
  %86 = vmatpush.msra.mxu0 %v34
  %87 = vmatpush.msra.mxu0 %v33
  %88 = vmatpush.msra.mxu0 %v32
  %89 = vmatpush.msra.mxu0 %v31
  %90 = vmatpush.msra.mxu0 %v30
  %91 = vmatpush.msra.mxu0 %v29
  %92 = vmatpush.msra.mxu0 %v28
  %93 = vmatpush.msra.mxu0 %v27
  %94 = vmatpush.msra.mxu0 %v26
  %95 = vmatmul.f32.gmra.mxu0 %v14
  %v96 = vpop.f32.mrf.mxu0
  %v97 = vadd.f32 %v64, %v96
  %98 = vmatmul.f32.gmra.mxu0 %v17
  %v99 = vpop.f32.mrf.mxu0
  %v100 = vadd.f32 %v64, %v99
  %101 = vmatmul.f32.gmra.mxu0 %v20
  %v102 = vpop.f32.mrf.mxu0
  %v103 = vadd.f32 %v64, %v102
  %104 = vmatmul.f32.gmra.mxu0 %v23
  %v105 = vpop.f32.mrf.mxu0
  %v106 = vadd.f32 %v64, %v105
  %107 = vdwg.mxu0
  %108 = vmatpush.msra.mxu0 %v57
  %109 = vmatpush.msra.mxu0 %v56
  %110 = vmatpush.msra.mxu0 %v55
  %111 = vmatpush.msra.mxu0 %v54
  %112 = vmatpush.msra.mxu0 %v53
  %113 = vmatpush.msra.mxu0 %v52
  %114 = vmatpush.msra.mxu0 %v51
  %115 = vmatpush.msra.mxu0 %v50
  %116 = vmatpush.msra.mxu0 %v49
  %117 = vmatpush.msra.mxu0 %v48
  %118 = vmatpush.msra.mxu0 %v47
  %119 = vmatpush.msra.mxu0 %v46
  %120 = vmatpush.msra.mxu0 %v45
  %121 = vmatpush.msra.mxu0 %v44
  %122 = vmatpush.msra.mxu0 %v43
  %123 = vmatpush.msra.mxu0 %v42
  %124 = vmatmul.f32.gmra.mxu0 %v15
  %v125 = vpop.f32.mrf.mxu0
  %v126 = vadd.f32 %v97, %v125
  %127 = vmatmul.f32.gmra.mxu0 %v18
  %v128 = vpop.f32.mrf.mxu0
  %v129 = vadd.f32 %v100, %v128
  %130 = vmatmul.f32.gmra.mxu0 %v21
  %v131 = vpop.f32.mrf.mxu0
  %v132 = vadd.f32 %v103, %v131
  %133 = vmatmul.f32.gmra.mxu0 %v24
  %v134 = vpop.f32.mrf.mxu0
  %v135 = vadd.f32 %v106, %v134
  %136 = vdwg.mxu0
  %137 = vmatpush.msra.mxu0 0.0
  %138 = vmatpush.msra.mxu0 0.0
  %139 = vmatpush.msra.mxu0 0.0
  %140 = vmatpush.msra.mxu0 0.0
  %141 = vmatpush.msra.mxu0 0.0
  %142 = vmatpush.msra.mxu0 0.0
  %143 = vmatpush.msra.mxu0 0.0
  %144 = vmatpush.msra.mxu0 0.0
  %145 = vmatpush.msra.mxu0 0.0
  %146 = vmatpush.msra.mxu0 0.0
  %147 = vmatpush.msra.mxu0 0.0
  %148 = vmatpush.msra.mxu0 0.0
  %149 = vmatpush.msra.mxu0 %v61
  %150 = vmatpush.msra.mxu0 %v60
  %151 = vmatpush.msra.mxu0 %v59
  %152 = vmatpush.msra.mxu0 %v58
  %153 = vmatmul.f32.gmra.mxu0 %v68
  %v154 = vpop.f32.mrf.mxu0
  %v155 = vadd.f32 %v126, %v154
  %156 = vmatmul.f32.gmra.mxu0 %v71
  %v157 = vpop.f32.mrf.mxu0
  %v158 = vadd.f32 %v129, %v157
  %159 = vmatmul.f32.gmra.mxu0 %v74
  %v160 = vpop.f32.mrf.mxu0
  %v161 = vadd.f32 %v132, %v160
  %162 = vmatmul.f32.gmra.mxu0 %v77
  %v163 = vpop.f32.mrf.mxu0
  %v164 = vadd.f32 %v135, %v163
  %165 = vdwg.mxu0
  %v166 = vmax.f32 %v155, 0.0
  %v167 = vmax.f32 %v158, 0.0
  %v168 = vmax.f32 %v161, 0.0
  %v169 = vmax.f32 %v164, 0.0
  %v170 = vmax.f32 %v166, %v167
  %v171 = vmax.f32 %v168, %v169
  %v172 = vmax.f32 %v170, %v171
  %173 = vst [vmem:[%s3] sm:$0xff] %v172
  // Predicated region
  $region14: #{convnet4_forward.7} parent=0 // pred_check
    _
  $region15: #{convnet4_forward.7} parent=0 // pred_check_branch
    %175 = sbr.rel (0) target = $region17
  $region16: #{convnet4_forward.7} parent=0 // pred_region
    _
  $region17: #{convnet4_forward.7} parent=0 // pred_fallthru
    _
  // Predicated region
  $region18: #{convnet4_forward.7} parent=0 // pred_check
    _
  $region19: #{convnet4_forward.7} parent=0 // pred_check_branch
    %177 = sbr.rel (0) target = $region21
  $region20: #{convnet4_forward.7} parent=0 // pred_region
    _
  $region21: #{convnet4_forward.7} parent=0 // pred_fallthru
    _

</llo_original>
